<compile_context>
chip_gen: v5e
topology: v5e:2x2
jax: 0.10.0
libtpu: 0.0.40
codegen_flags: <defaults>
</compile_context>

<pallas_src>
import jax
import jax.numpy as jnp
from jax.experimental import pallas as pl
from jax.experimental.pallas import tpu as pltpu

HIDDEN = 32        # hidden_size (small test size; module default is 64)
NUM_ACTIONS = 10   # num_actions
MAX_DEPTH = 6      # controller max rollout length
LANE = 128         # padded logits width (lane-dense output)


# ---------------------------------------------------------------------------
# Shared in-kernel math: fused GRUCell gates + fc head.
#   emb, h  : (B, H) f32 values
#   wg_ref  : (2H, 4H) fused gate weight  rows [x-block ; h-block], cols [r | z | i_n | h_n]
#   bg_ref  : (1, 4H)  fused gate bias    [b_ih_r+b_hh_r, b_ih_z+b_hh_z, b_ih_n, b_hh_n]
#   wfc_ref : (H, LANE) fc weight, zero-padded past NUM_ACTIONS
#   bfc_ref : (1, LANE) fc bias,   zero-padded past NUM_ACTIONS
# ---------------------------------------------------------------------------
def _gru_fc_math(emb, h, wg_ref, bg_ref, wfc_ref, bfc_ref):
    H = h.shape[-1]
    xh = jnp.concatenate([emb, h], axis=-1)                                  # (B, 2H)
    g = jnp.dot(xh, wg_ref[...], preferred_element_type=jnp.float32) + bg_ref[...]
    r = jax.nn.sigmoid(g[:, 0:H])
    z = jax.nn.sigmoid(g[:, H:2 * H])
    n = jnp.tanh(g[:, 2 * H:3 * H] + r * g[:, 3 * H:4 * H])
    h_new = (1.0 - z) * n + z * h                                            # (B, H)
    logits = (jnp.dot(h_new, wfc_ref[...], preferred_element_type=jnp.float32)
              + bfc_ref[...])                                                # (B, LANE)
    return h_new, logits


# ---------------------------------------------------------------------------
# Single-step kernels (Controller.forward)
# ---------------------------------------------------------------------------
def _step_kernel_embed(x_ref, h_ref, wg_ref, bg_ref, wfc_ref, bfc_ref,
                       h_out_ref, logits_ref):
    # is_embed=True path: x is already an embedding row, shape (1, H)
    h_new, logits = _gru_fc_math(x_ref[...], h_ref[...],
                                 wg_ref, bg_ref, wfc_ref, bfc_ref)
    h_out_ref[...] = h_new
    logits_ref[...] = logits


def _step_kernel_token(idx_ref,                       # scalar-prefetch (L,) int32 in SMEM
                       embed_ref, h_ref, wg_ref, bg_ref, wfc_ref, bfc_ref,
                       h_out_ref, logits_ref):
    # is_embed=False path: in-kernel embedding lookup via one-hot @ table (MXU).
    L = h_ref.shape[0]
    A = embed_ref.shape[0]
    lane = jax.lax.broadcasted_iota(jnp.int32, (1, A), 1)
    rows = [(lane == idx_ref[i]).astype(jnp.float32) for i in range(L)]
    onehot = rows[0] if L == 1 else jnp.concatenate(rows, axis=0)            # (L, A)
    emb = jnp.dot(onehot, embed_ref[...], preferred_element_type=jnp.float32)
    h_new, logits = _gru_fc_math(emb, h_ref[...],
                                 wg_ref, bg_ref, wfc_ref, bfc_ref)
    h_out_ref[...] = h_new
    logits_ref[...] = logits


def _step_embed_call(emb, h, pk):
    B = emb.shape[0]
    vmem = pl.BlockSpec(memory_space=pltpu.MemorySpace.VMEM)
    return pl.pallas_call(
        _step_kernel_embed,
        out_shape=(jax.ShapeDtypeStruct((B, HIDDEN), jnp.float32),
                   jax.ShapeDtypeStruct((B, LANE), jnp.float32)),
        in_specs=[vmem] * 6,
        out_specs=(vmem, vmem),
    )(emb, h, pk["w_gate"], pk["b_gate"], pk["w_fc_pad"], pk["b_fc_pad"])


def _step_token_call(idx, h, pk):
    L = h.shape[0]
    cmap = lambda i, idx_ref: (0, 0)   # constant block index; idx_ref is scalar-prefetch
    grid_spec = pltpu.PrefetchScalarGridSpec(
        num_scalar_prefetch=1,
        grid=(1,),
        in_specs=[pl.BlockSpec((NUM_ACTIONS, HIDDEN), cmap),   # embed table
                  pl.BlockSpec((L, HIDDEN), cmap),             # h
                  pl.BlockSpec((2 * HIDDEN, 4 * HIDDEN), cmap),
                  pl.BlockSpec((1, 4 * HIDDEN), cmap),
                  pl.BlockSpec((HIDDEN, LANE), cmap),
                  pl.BlockSpec((1, LANE), cmap)],
        out_specs=(pl.BlockSpec((L, HIDDEN), cmap),
                   pl.BlockSpec((L, LANE), cmap)),
    )
    return pl.pallas_call(
        _step_kernel_token,
        grid_spec=grid_spec,
        out_shape=(jax.ShapeDtypeStruct((L, HIDDEN), jnp.float32),
                   jax.ShapeDtypeStruct((L, LANE), jnp.float32)),
        compiler_params=pltpu.CompilerParams(dimension_semantics=("arbitrary",)),
    )(idx, pk["embed"], h, pk["w_gate"], pk["b_gate"], pk["w_fc_pad"], pk["b_fc_pad"])


def controller_forward(packed, x, h, is_embed):
    """Matches Controller.forward(x, h, is_embed)."""
    if is_embed:
        emb = x[None, :].astype(jnp.float32)                  # (1, H)
        if h is None:
            h = jnp.zeros((1, HIDDEN), jnp.float32)
        h_new, logits_pad = _step_embed_call(emb, h.astype(jnp.float32), packed)
    else:
        idx = jnp.asarray(x, dtype=jnp.int32).reshape(-1)     # (L,)
        L = idx.shape[0]
        if h is None:
            h = jnp.zeros((L, HIDDEN), jnp.float32)
        h_new, logits_pad = _step_token_call(idx, h.astype(jnp.float32), packed)

    logits = logits_pad[:, :NUM_ACTIONS]
    if logits.shape[0] == 1:                                  # x.squeeze(dim=0)
        logits = jnp.squeeze(logits, axis=0)
    return logits, h_new


# ---------------------------------------------------------------------------
# Fused greedy rollout: all timesteps in ONE pallas_call.
# h and the greedy token are carried in scratch; weights stay VMEM-resident.
# TODO(synk): torch.distributions.Categorical sampling stays host-side; the fused
#             kernel uses deterministic greedy argmax for next-token selection.
# ---------------------------------------------------------------------------
def _rollout_kernel(x0_ref, embed_ref, wg_ref, bg_ref, wfc_ref, bfc_ref,
                    logits_out_ref, hfin_ref, h_scr, idx_scr):
    t = pl.program_id(0)
    A = embed_ref.shape[0]

    @pl.when(t == 0)
    def _():
        h_scr[...] = jnp.zeros_like(h_scr)      # h = None  ->  zeros, in-kernel
        idx_scr[...] = jnp.zeros_like(idx_scr)

    # input embedding for this step: x0 at t==0, else embed[argmax(prev logits)]
    lane_a = jax.lax.broadcasted_iota(jnp.int32, (1, A), 1)
    onehot = (lane_a == idx_scr[...]).astype(jnp.float32)                    # (1, A)
    emb_tok = jnp.dot(onehot, embed_ref[...], preferred_element_type=jnp.float32)
    emb = jnp.where(t == 0, x0_ref[...], emb_tok)

    h_new, logits = _gru_fc_math(emb, h_scr[...], wg_ref, bg_ref, wfc_ref, bfc_ref)
    h_scr[...] = h_new
    hfin_ref[...] = h_new
    logits_out_ref[0] = logits                                               # (1, LANE)

    # greedy next token = first argmax over the NUM_ACTIONS real lanes (vector-only)
    lane_l = jax.lax.broadcasted_iota(jnp.int32, (1, LANE), 1)
    masked = jnp.where(lane_l < A, logits, -jnp.inf)
    m = jnp.max(masked, axis=-1, keepdims=True)                              # (1, 1)
    cand = jnp.where(masked == m, lane_l.astype(jnp.float32), float(A))
    idx_scr[...] = jnp.min(cand, axis=-1, keepdims=True).astype(jnp.int32)   # (1, 1)


def controller_rollout_greedy(pk, max_steps=MAX_DEPTH):
    T = int(max_steps)
    x0 = jnp.zeros((1, HIDDEN), jnp.float32)   # generate_rollout starts from zeros(H)
    c2 = lambda t: (0, 0)
    grid_spec = pltpu.PrefetchScalarGridSpec(
        num_scalar_prefetch=0,
        grid=(T,),
        in_specs=[pl.BlockSpec((1, HIDDEN), c2),                 # x0
                  pl.BlockSpec((NUM_ACTIONS, HIDDEN), c2),       # embedding table
                  pl.BlockSpec((2 * HIDDEN, 4 * HIDDEN), c2),    # fused gate weight
                  pl.BlockSpec((1, 4 * HIDDEN), c2),             # fused gate bias
                  pl.BlockSpec((HIDDEN, LANE), c2),              # fc weight (padded)
                  pl.BlockSpec((1, LANE), c2)],                  # fc bias (padded)
        out_specs=(pl.BlockSpec((1, 1, LANE), lambda t: (t, 0, 0)),   # per-step logits
                   pl.BlockSpec((1, HIDDEN), c2)),                    # final hidden
        scratch_shapes=[pltpu.VMEM((1, HIDDEN), jnp.float32),    # carried hidden state
                        pltpu.VMEM((1, 1), jnp.int32)],          # carried greedy token
    )
    logits_all, h_final = pl.pallas_call(
        _rollout_kernel,
        grid_spec=grid_spec,
        out_shape=(jax.ShapeDtypeStruct((T, 1, LANE), jnp.float32),
                   jax.ShapeDtypeStruct((1, HIDDEN), jnp.float32)),
        compiler_params=pltpu.CompilerParams(dimension_semantics=("arbitrary",)),
    )(x0, pk["embed"], pk["w_gate"], pk["b_gate"], pk["w_fc_pad"], pk["b_fc_pad"])

    logits = logits_all.reshape(T, LANE)[:, :NUM_ACTIONS]
    actions = jnp.argmax(logits, axis=-1).astype(jnp.int32)
    return logits, actions, h_final


# ---------------------------------------------------------------------------
# Parameters (PyTorch-style) + packing into the fused kernel layout
# ---------------------------------------------------------------------------
def init_params(key):
    ks = jax.random.split(key, 7)
    scale = 1.0 / jnp.sqrt(HIDDEN)
    return {
        "embed":  jax.random.normal(ks[0], (NUM_ACTIONS, HIDDEN), jnp.float32),
        # GRUCell weights stored transposed, gate order [r | z | n]: (H, 3H)
        "w_ih_t": jax.random.uniform(ks[1], (HIDDEN, 3 * HIDDEN), jnp.float32, -scale, scale),
        "w_hh_t": jax.random.uniform(ks[2], (HIDDEN, 3 * HIDDEN), jnp.float32, -scale, scale),
        "b_ih":   jax.random.uniform(ks[3], (1, 3 * HIDDEN), jnp.float32, -scale, scale),
        "b_hh":   jax.random.uniform(ks[4], (1, 3 * HIDDEN), jnp.float32, -scale, scale),
        # Linear weight stored transposed: (H, A)
        "w_fc_t": jax.random.uniform(ks[5], (HIDDEN, NUM_ACTIONS), jnp.float32, -scale, scale),
        "b_fc":   jax.random.uniform(ks[6], (1, NUM_ACTIONS), jnp.float32, -scale, scale),
    }


def pack_params(p):
    H, A = HIDDEN, NUM_ACTIONS
    wih, whh = p["w_ih_t"], p["w_hh_t"]                        # (H, 3H) each
    zeros = jnp.zeros((H, H), jnp.float32)
    top = jnp.concatenate([wih[:, :H], wih[:, H:2 * H], wih[:, 2 * H:], zeros], axis=1)
    bot = jnp.concatenate([whh[:, :H], whh[:, H:2 * H], zeros, whh[:, 2 * H:]], axis=1)
    w_gate = jnp.concatenate([top, bot], axis=0)               # (2H, 4H)

    bih, bhh = p["b_ih"], p["b_hh"]                            # (1, 3H) each
    b_gate = jnp.concatenate([bih[:, :H] + bhh[:, :H],
                              bih[:, H:2 * H] + bhh[:, H:2 * H],
                              bih[:, 2 * H:],                  # b_ih_n (outside r*)
                              bhh[:, 2 * H:]], axis=1)         # b_hh_n (inside r*)

    w_fc_pad = jnp.zeros((H, LANE), jnp.float32).at[:, :A].set(p["w_fc_t"])
    b_fc_pad = jnp.zeros((1, LANE), jnp.float32).at[:, :A].set(p["b_fc"])
    return {"embed": p["embed"].astype(jnp.float32),
            "w_gate": w_gate, "b_gate": b_gate,
            "w_fc_pad": w_fc_pad, "b_fc_pad": b_fc_pad}


# Pure-JAX reference (PyTorch GRUCell semantics) for correctness checks
def _reference_forward(params, x, h, is_embed):
    H = HIDDEN
    if not is_embed:
        emb = jnp.take(params["embed"], x, axis=0)
    else:
        emb = x[None, :]
    emb = emb.astype(jnp.float32)
    if h is None:
        h = jnp.zeros((emb.shape[0], H), jnp.float32)
    gi = emb @ params["w_ih_t"] + params["b_ih"]
    gh = h @ params["w_hh_t"] + params["b_hh"]
    r = jax.nn.sigmoid(gi[:, :H] + gh[:, :H])
    z = jax.nn.sigmoid(gi[:, H:2 * H] + gh[:, H:2 * H])
    n = jnp.tanh(gi[:, 2 * H:] + r * gh[:, 2 * H:])
    h_new = (1.0 - z) * n + z * h
    logits = h_new @ params["w_fc_t"] + params["b_fc"]
    if logits.shape[0] == 1:
        logits = jnp.squeeze(logits, axis=0)
    return logits, h_new


if __name__ == "__main__":
    key = jax.random.PRNGKey(0)
    params = init_params(key)
    packed = pack_params(params)

    # --- single-step forward, is_embed=True (x is a raw (H,) vector, h=None) ---
    x0 = jnp.zeros((HIDDEN,), dtype=jnp.float32)
    logits1, h1 = controller_forward(packed, x0, None, is_embed=True)
    ref_logits1, ref_h1 = _reference_forward(params, x0, None, True)

    # --- single-step forward, is_embed=False (x is a (1,) int token index) ---
    idx = jnp.argmax(logits1).astype(jnp.int32)[None]
    logits2, h2 = controller_forward(packed, idx, h1, is_embed=False)
    ref_logits2, ref_h2 = _reference_forward(params, idx, ref_h1, False)

    # --- fused greedy rollout kernel vs. stepping the single-step kernel ---
    roll_logits, roll_actions, roll_h = controller_rollout_greedy(packed, MAX_DEPTH)

    h = None
    inp = x0
    is_embed = True
    step_logits, step_actions = [], []
    for _ in range(MAX_DEPTH):
        lg, h = controller_forward(packed, inp, h, is_embed)
        step_logits.append(lg)
        a = jnp.argmax(lg).astype(jnp.int32)
        step_actions.append(a)
        inp = a[None]
        is_embed = False
    step_logits = jnp.stack(step_logits)
    step_actions = jnp.stack(step_actions)

    jax.block_until_ready((logits1, h1, logits2, h2,
                           roll_logits, roll_actions, roll_h))

    assert logits1.shape == (NUM_ACTIONS,) and h1.shape == (1, HIDDEN)
    assert logits2.shape == (NUM_ACTIONS,) and h2.shape == (1, HIDDEN)
    assert jnp.allclose(logits1, ref_logits1, atol=1e-4)
    assert jnp.allclose(h1, ref_h1, atol=1e-4)
    assert jnp.allclose(logits2, ref_logits2, atol=1e-4)
    assert jnp.allclose(h2, ref_h2, atol=1e-4)

    assert roll_logits.shape == (MAX_DEPTH, NUM_ACTIONS)
    assert roll_h.shape == (1, HIDDEN)
    assert jnp.allclose(roll_logits, step_logits, atol=1e-4)
    assert bool(jnp.all(roll_actions == step_actions))
    assert jnp.allclose(roll_h, h, atol=1e-4)

    print("KERNEL_OK")
</pallas_src>

<mosaic_0001>
module attributes {stable_mosaic.version = 11 : i64} {
  func.func @_step_kernel_embed(%arg0: memref<1x32xf32, #tpu.memory_space<vmem>>, %arg1: memref<1x32xf32, #tpu.memory_space<vmem>>, %arg2: memref<64x128xf32, #tpu.memory_space<vmem>>, %arg3: memref<1x128xf32, #tpu.memory_space<vmem>>, %arg4: memref<32x128xf32, #tpu.memory_space<vmem>>, %arg5: memref<1x128xf32, #tpu.memory_space<vmem>>, %arg6: memref<1x32xf32, #tpu.memory_space<vmem>>, %arg7: memref<1x128xf32, #tpu.memory_space<vmem>>) attributes {dimension_semantics = [], scalar_prefetch = 0 : i64, scratch_operands = 0 : i64, tpu.core_type = #tpu.core_type<tc>} {
    %c0 = arith.constant 0 : index
    %c0_0 = arith.constant 0 : index
    %0 = vector.load %arg0[%c0, %c0_0] : memref<1x32xf32, #tpu.memory_space<vmem>>, vector<1x32xf32>
    %c0_1 = arith.constant 0 : index
    %c0_2 = arith.constant 0 : index
    %1 = vector.load %arg1[%c0_1, %c0_2] : memref<1x32xf32, #tpu.memory_space<vmem>>, vector<1x32xf32>
    %2 = tpu.concatenate %0, %1 in 1 : vector<1x32xf32>, vector<1x32xf32> -> vector<1x64xf32>
    %c0_3 = arith.constant 0 : index
    %c0_4 = arith.constant 0 : index
    %3 = vector.load %arg2[%c0_3, %c0_4] : memref<64x128xf32, #tpu.memory_space<vmem>>, vector<64x128xf32>
    %cst = arith.constant dense<0.000000e+00> : vector<1x128xf32>
    %4 = tpu.matmul %2, %3, %cst {dimension_numbers = #tpu.dot_dimension_numbers<[1], [0], [0], [1], [0, 0, 1, 1], [], []>} : vector<1x64xf32>, vector<64x128xf32>, vector<1x128xf32> -> vector<1x128xf32>
    %c0_5 = arith.constant 0 : index
    %c0_6 = arith.constant 0 : index
    %5 = vector.load %arg3[%c0_5, %c0_6] : memref<1x128xf32, #tpu.memory_space<vmem>>, vector<1x128xf32>
    %6 = arith.addf %4, %5 : vector<1x128xf32>
    %7 = vector.extract_strided_slice %6 {offsets = [0, 0], sizes = [1, 32], strides = [1, 1]} : vector<1x128xf32> to vector<1x32xf32>
    %8 = arith.negf %7 : vector<1x32xf32>
    %9 = math.exp %8 : vector<1x32xf32>
    %cst_7 = arith.constant 1.000000e+00 : f32
    %10 = vector.broadcast %cst_7 : f32 to vector<1x32xf32>
    %11 = arith.addf %10, %9 : vector<1x32xf32>
    %12 = arith.divf %10, %11 : vector<1x32xf32>
    %13 = vector.extract_strided_slice %6 {offsets = [0, 32], sizes = [1, 32], strides = [1, 1]} : vector<1x128xf32> to vector<1x32xf32>
    %14 = arith.negf %13 : vector<1x32xf32>
    %15 = math.exp %14 : vector<1x32xf32>
    %cst_8 = arith.constant 1.000000e+00 : f32
    %16 = vector.broadcast %cst_8 : f32 to vector<1x32xf32>
    %17 = arith.addf %16, %15 : vector<1x32xf32>
    %18 = arith.divf %16, %17 : vector<1x32xf32>
    %19 = vector.extract_strided_slice %6 {offsets = [0, 64], sizes = [1, 32], strides = [1, 1]} : vector<1x128xf32> to vector<1x32xf32>
    %20 = vector.extract_strided_slice %6 {offsets = [0, 96], sizes = [1, 32], strides = [1, 1]} : vector<1x128xf32> to vector<1x32xf32>
    %21 = arith.mulf %12, %20 : vector<1x32xf32>
    %22 = arith.addf %19, %21 : vector<1x32xf32>
    %23 = math.tanh %22 : vector<1x32xf32>
    %cst_9 = arith.constant 1.000000e+00 : f32
    %24 = vector.broadcast %cst_9 : f32 to vector<1x32xf32>
    %25 = arith.subf %24, %18 : vector<1x32xf32>
    %26 = arith.mulf %25, %23 : vector<1x32xf32>
    %27 = arith.mulf %18, %1 : vector<1x32xf32>
    %28 = arith.addf %26, %27 : vector<1x32xf32>
    %c0_10 = arith.constant 0 : index
    %c0_11 = arith.constant 0 : index
    %29 = vector.load %arg4[%c0_10, %c0_11] : memref<32x128xf32, #tpu.memory_space<vmem>>, vector<32x128xf32>
    %cst_12 = arith.constant dense<0.000000e+00> : vector<1x128xf32>
    %30 = tpu.matmul %28, %29, %cst_12 {dimension_numbers = #tpu.dot_dimension_numbers<[1], [0], [0], [1], [0, 0, 1, 1], [], []>} : vector<1x32xf32>, vector<32x128xf32>, vector<1x128xf32> -> vector<1x128xf32>
    %c0_13 = arith.constant 0 : index
    %c0_14 = arith.constant 0 : index
    %31 = vector.load %arg5[%c0_13, %c0_14] : memref<1x128xf32, #tpu.memory_space<vmem>>, vector<1x128xf32>
    %32 = arith.addf %30, %31 : vector<1x128xf32>
    %c0_15 = arith.constant 0 : index
    %c0_16 = arith.constant 0 : index
    %33 = vector.load %arg6[%c0_15, %c0_16] : memref<1x32xf32, #tpu.memory_space<vmem>>, vector<1x32xf32>
    tpu.vector_store %arg6[%c0_15, %c0_16], %28 {strides = array<i32>} : memref<1x32xf32, #tpu.memory_space<vmem>>, vector<1x32xf32>,
    %c0_17 = arith.constant 0 : index
    %c0_18 = arith.constant 0 : index
    %34 = vector.load %arg7[%c0_17, %c0_18] : memref<1x128xf32, #tpu.memory_space<vmem>>, vector<1x128xf32>
    tpu.vector_store %arg7[%c0_17, %c0_18], %32 {strides = array<i32>} : memref<1x128xf32, #tpu.memory_space<vmem>>, vector<1x128xf32>,
    return
  }
}

</mosaic_0001>

<llo_original>
// kernel: tpu_custom_call.1
$region0: #{tpu_custom_call.1}
  #allocation0 [shape = 'u32[]', space=smem, size = 0x4, offset = 0x4, fixed_abs, tag = 'smem constant byte address 0x4 - core index']
  #allocation1 [shape = 'u32[72,128]{1,0:T(1,128)}', space=vmem, size = 0x9000, scoped, tag = 'internal scratch']
  %s0 = inlined_call_operand.hbm [shape: f32[1,32], index: 0, kind: input, shape index: {}]
  %s1 = inlined_call_operand.hbm [shape: f32[1,32], index: 1, kind: input, shape index: {}]
  %s2 = inlined_call_operand.hbm [shape: f32[64,128], index: 2, kind: input, shape index: {}]
  %s3 = inlined_call_operand.vmem [shape: f32[1,128], index: 3, kind: input, shape index: {}]
  %s4 = inlined_call_operand.hbm [shape: f32[32,128], index: 4, kind: input, shape index: {}]
  %s5 = inlined_call_operand.vmem [shape: f32[1,128], index: 5, kind: input, shape index: {}]
  %s6 = inlined_call_operand.hbm [shape: f32[1,32], index: 6, kind: output, shape index: {0}]
  %s7 = inlined_call_operand.hbm [shape: f32[1,128], index: 7, kind: output, shape index: {1}]
  %8 = xla_tuple %s6, %s7
  %s9 = sld [smem:[#allocation0]]
  $region58: #{tpu_custom_call.1} parent=0
    _
  %s11 = ssub.s32 1, %s9
  %s12 = scalar_select 0, %s11, %s9
  $region1: #{tpu_custom_call.1} parent=0
    #allocation2 [shape = 'u8[512]{0}', space=vmem, size = 0x400, scoped, tag = 'input window, operand 0, single buffered']
    #allocation3 [shape = 's32[1]{0}', space=sflag, size = 0x4, scoped, tag = 'scoped memory for tpu_custom_call.1']
    #allocation4 [shape = 's32[1]{0}', space=sflag, size = 0x4, scoped, tag = 'scoped memory for tpu_custom_call.1']
    #allocation5 [shape = 'u8[512]{0}', space=vmem, size = 0x400, scoped, tag = 'input window, operand 1, single buffered']
    #allocation6 [shape = 's32[1]{0}', space=sflag, size = 0x4, scoped, tag = 'scoped memory for tpu_custom_call.1']
    #allocation7 [shape = 'u8[32768]{0}', space=vmem, size = 0x8000, scoped, tag = 'input window, operand 2, single buffered']
    #allocation8 [shape = 'u8[16384]{0}', space=vmem, size = 0x4000, scoped, tag = 'input window, operand 4, single buffered']
    #allocation9 [shape = 's32[1]{0}', space=sflag, size = 0x4, scoped, tag = 'scoped memory for tpu_custom_call.1']
    #allocation10 [shape = 'u8[512]{0}', space=vmem, size = 0x400, scoped, tag = 'output window, operand 0, single buffered']
    #allocation11 [shape = 'u8[512]{0}', space=vmem, size = 0x400, scoped, tag = 'output window, operand 1, single buffered']
    #allocation12 [shape = 's32[1]{0}', space=sflag, size = 0x4, scoped, tag = 'scoped memory for tpu_custom_call.1']
    %13 = vsyncpa [#allocation3], 0
    %14 = vsyncpa [#allocation6], 0
    %15 = vsyncpa [#allocation9], 0
    %16 = vsyncpa [#allocation4], 0
    %17 = vsyncpa [#allocation12], 0
    // Predicated region
    $region2: #{tpu_custom_call.1} parent=1 // pred_check
      _
    $region3: #{tpu_custom_call.1} parent=1 // pred_check_branch
      %19 = sbr.rel (0) target = $region5
    $region4: #{tpu_custom_call.1} parent=1 // pred_region
      %21 = vsyncadd [#allocation3], 0
      %s23 = sshll.u32 %s0, 4
      %s24 = int_to_ptr.hbm [resolvable:$true] %s23
      %s25 = sshll.u32 [#allocation2], 4
      %s26 = int_to_ptr.vmem [resolvable:$true] %s25
      %28 = dma.hbm_to_vmem [thread:$0]  %s24, 16, %s26, [#allocation3]
    $region5: #{tpu_custom_call.1} parent=1 // pred_fallthru
      _
    // Predicated region
    $region6: #{tpu_custom_call.1} parent=1 // pred_check
      _
    $region7: #{tpu_custom_call.1} parent=1 // pred_check_branch
      %30 = sbr.rel (0) target = $region9
    $region8: #{tpu_custom_call.1} parent=1 // pred_region
      %32 = vsyncadd [#allocation6], 0
      %s34 = sshll.u32 %s1, 4
      %s35 = int_to_ptr.hbm [resolvable:$true] %s34
      %s36 = sshll.u32 [#allocation5], 4
      %s37 = int_to_ptr.vmem [resolvable:$true] %s36
      %39 = dma.hbm_to_vmem [thread:$0]  %s35, 16, %s37, [#allocation6]
    $region9: #{tpu_custom_call.1} parent=1 // pred_fallthru
      _
    // Predicated region
    $region10: #{tpu_custom_call.1} parent=1 // pred_check
      _
    $region11: #{tpu_custom_call.1} parent=1 // pred_check_branch
      %41 = sbr.rel (0) target = $region13
    $region12: #{tpu_custom_call.1} parent=1 // pred_region
      %43 = vsyncadd [#allocation6], 0
      %s44 = sshll.u32 %s2, 4
      %s45 = int_to_ptr.hbm [resolvable:$true] %s44
      %s46 = sshll.u32 [#allocation7], 4
      %s47 = int_to_ptr.vmem [resolvable:$true] %s46
      %52 = dma.hbm_to_vmem [thread:$0]  %s45, 1024, %s47, [#allocation6], 128, 128, 8
    $region13: #{tpu_custom_call.1} parent=1 // pred_fallthru
      _
    // Predicated region
    $region14: #{tpu_custom_call.1} parent=1 // pred_check
      _
    $region15: #{tpu_custom_call.1} parent=1 // pred_check_branch
      %54 = sbr.rel (0) target = $region17
    $region16: #{tpu_custom_call.1} parent=1 // pred_region
      _
    $region17: #{tpu_custom_call.1} parent=1 // pred_fallthru
      _
    // Predicated region
    $region18: #{tpu_custom_call.1} parent=1 // pred_check
      _
    $region19: #{tpu_custom_call.1} parent=1 // pred_check_branch
      %56 = sbr.rel (0) target = $region21
    $region20: #{tpu_custom_call.1} parent=1 // pred_region
      %58 = vsyncadd [#allocation9], 0
      %s59 = sshll.u32 %s4, 4
      %s60 = int_to_ptr.hbm [resolvable:$true] %s59
      %s61 = sshll.u32 [#allocation8], 4
      %s62 = int_to_ptr.vmem [resolvable:$true] %s61
      %67 = dma.hbm_to_vmem [thread:$0]  %s60, 512, %s62, [#allocation9], 128, 128, 8
    $region21: #{tpu_custom_call.1} parent=1 // pred_fallthru
      _
    // Predicated region
    $region22: #{tpu_custom_call.1} parent=1 // pred_check
      _
    $region23: #{tpu_custom_call.1} parent=1 // pred_check_branch
      %69 = sbr.rel (0) target = $region25
    $region24: #{tpu_custom_call.1} parent=1 // pred_region
      _
    $region25: #{tpu_custom_call.1} parent=1 // pred_fallthru
      _
    // Predicated region
    $region26: #{tpu_custom_call.1} parent=1 // pred_check
      _
    $region27: #{tpu_custom_call.1} parent=1 // pred_check_branch
      %71 = sbr.rel (0) target = $region29
    $region28: #{tpu_custom_call.1} parent=1 // pred_region
      %73 = dma.done [#allocation3], 16
    $region29: #{tpu_custom_call.1} parent=1 // pred_fallthru
      _
    // Predicated region
    $region30: #{tpu_custom_call.1} parent=1 // pred_check
      _
    $region31: #{tpu_custom_call.1} parent=1 // pred_check_branch
      %75 = sbr.rel (0) target = $region33
    $region32: #{tpu_custom_call.1} parent=1 // pred_region
      %77 = dma.done [#allocation6], 16
    $region33: #{tpu_custom_call.1} parent=1 // pred_fallthru
      _
    // Predicated region
    $region34: #{tpu_custom_call.1} parent=1 // pred_check
      _
    $region35: #{tpu_custom_call.1} parent=1 // pred_check_branch
      %79 = sbr.rel (0) target = $region37
    $region36: #{tpu_custom_call.1} parent=1 // pred_region
      %81 = dma.done [#allocation6], 1024
    $region37: #{tpu_custom_call.1} parent=1 // pred_fallthru
      _
    // Predicated region
    $region38: #{tpu_custom_call.1} parent=1 // pred_check
      _
    $region39: #{tpu_custom_call.1} parent=1 // pred_check_branch
      %83 = sbr.rel (0) target = $region41
    $region40: #{tpu_custom_call.1} parent=1 // pred_region
      %85 = dma.done [#allocation9], 512
    $region41: #{tpu_custom_call.1} parent=1 // pred_fallthru
      _
    %v86 = vld [vmem:[#allocation2] sm:$0x1]
    %v87 = vld [vmem:[#allocation5] sm:$0x1]
    %v89 = vperm.slane %v87, 0
    %90 = vrot.lane.b32.xlu0 %v89, 32
    %v91 = vpop.permute.xlu0 %90
    %vm93 = vcmask 261120
    %v94 = vsel %vm93, %v86, %v91
    %v95 = vld [vmem:[#allocation7] sm:$0xff]
    %v96 = vld [vmem:[#allocation7 + $0x8] sm:$0xff]
    %v97 = vld [vmem:[#allocation7 + $0x10] sm:$0xff]
    %v98 = vld [vmem:[#allocation7 + $0x18] sm:$0xff]
    %v99 = vld [vmem:[#allocation7 + $0x20] sm:$0xff]
    %v100 = vld [vmem:[#allocation7 + $0x28] sm:$0xff]
    %v101 = vld [vmem:[#allocation7 + $0x30] sm:$0xff]
    %v102 = vld [vmem:[#allocation7 + $0x38] sm:$0xff]
    %v103 = vld [vmem:[%s3] sm:$0x1]
    %vm104 = vcmask 523264
    %v106 = vsel %vm104, %v94, 0
    %108 = vmatpush.msra.mxu0 0.0
    %109 = vmatpush.msra.mxu0 0.0
    %110 = vmatpush.msra.mxu0 0.0
    %111 = vmatpush.msra.mxu0 0.0
    %112 = vmatpush.msra.mxu0 0.0
    %113 = vmatpush.msra.mxu0 0.0
    %114 = vmatpush.msra.mxu0 0.0
    %115 = vmatpush.msra.mxu0 0.0
    %116 = vmatpush.msra.mxu0 %v102
    %117 = vmatpush.msra.mxu0 %v101
    %118 = vmatpush.msra.mxu0 %v100
    %119 = vmatpush.msra.mxu0 %v99
    %120 = vmatpush.msra.mxu0 %v98
    %121 = vmatpush.msra.mxu0 %v97
    %122 = vmatpush.msra.mxu0 %v96
    %123 = vmatpush.msra.mxu0 %v95
    %124 = vmatmul.f32.gmra.mxu0 %v106
    %v125 = vpop.f32.mrf.mxu0
    %v126 = vadd.f32 %v103, %v125
    %127 = vdwg.mxu0
    %v128 = vxor.u32 %v126, 2147483648
    %v129 = vmul.f32 %v128, 1.442695
    %v130 = vpow.pop %v129
    %v131 = vadd.f32 %v130, 1.0
    %v132 = vrcp.pop %v131
    %v133 = vmul.f32 %v131, %v132
    %v134 = vsub.f32 1.0, %v133
    %v135 = vmul.f32 %v132, %v134
    %v136 = vadd.f32 %v132, %v135
    %vm137 = vweird.f32 %v131
    %vm138 = vweird.f32 %v132
    %vm139 = vmor %vm137, %vm138
    %v140 = vsel %vm139, %v132, %v136
    %v141 = vand.u32 2147483647, %v131
    %vm142 = vcmp.eq.f32.partialorder %v141, 8.507059e+37
    %v143 = vand.u32 %v131, 2147483648
    %v144 = vor.u32 1.1754944e-38, %v143
    %v145 = vsel %vm142, %v144, %v140
    %v146 = vmul.f32 1.0, %v145
    %148 = vrot.lane.b32.xlu0 %v126, 32
    %v149 = vpop.permute.xlu0 %148
    %v151 = vmul.f32 %v146, %v149
    %153 = vrot.lane.b32.xlu0 %v151, 64
    %v154 = vpop.permute.xlu0 %153
    %v156 = vadd.f32 %v126, %v154
    %v157 = vtanh.pop %v156
    %v158 = vsub.f32 1.0, %v146
    %160 = vrot.lane.b32.xlu0 %v157, 96
    %v161 = vpop.permute.xlu0 %160
    %v163 = vmul.f32 %v158, %v161
    %v164 = vmul.f32 %v146, %v91
    %v165 = vadd.f32 %v163, %v164
    %v166 = vld [vmem:[#allocation8] sm:$0xff]
    %v167 = vld [vmem:[#allocation8 + $0x8] sm:$0xff]
    %v168 = vld [vmem:[#allocation8 + $0x10] sm:$0xff]
    %v169 = vld [vmem:[#allocation8 + $0x18] sm:$0xff]
    %v170 = vld [vmem:[%s5] sm:$0x1]
    %172 = vrot.lane.b32.xlu0 %v165, 96
    %v173 = vpop.permute.xlu0 %172
    %v174 = vsel %vm93, %v173, 0
    %176 = vmatpush.msra.mxu0 0.0
    %177 = vmatpush.msra.mxu0 0.0
    %178 = vmatpush.msra.mxu0 0.0
    %179 = vmatpush.msra.mxu0 0.0
    %180 = vmatpush.msra.mxu0 0.0
    %181 = vmatpush.msra.mxu0 0.0
    %182 = vmatpush.msra.mxu0 0.0
    %183 = vmatpush.msra.mxu0 0.0
    %184 = vmatpush.msra.mxu0 0.0
    %185 = vmatpush.msra.mxu0 0.0
    %186 = vmatpush.msra.mxu0 0.0
    %187 = vmatpush.msra.mxu0 0.0
    %188 = vmatpush.msra.mxu0 %v169
    %189 = vmatpush.msra.mxu0 %v168
    %190 = vmatpush.msra.mxu0 %v167
    %191 = vmatpush.msra.mxu0 %v166
    %192 = vmatmul.f32.gmra.mxu0 %v174
    %v193 = vpop.f32.mrf.mxu0
    %v194 = vadd.f32 %v170, %v193
    %195 = vdwg.mxu0
    %vm197 = vcmask 253952
    %198 = vst.msk [vmem:[#allocation10] sm:$0x1] %vm197, %v173
    %199 = vst [vmem:[#allocation11] sm:$0x1] %v194
    // Predicated region
    $region42: #{tpu_custom_call.1} parent=1 // pred_check
      _
    $region43: #{tpu_custom_call.1} parent=1 // pred_check_branch
      %201 = sbr.rel (0) target = $region45
    $region44: #{tpu_custom_call.1} parent=1 // pred_region
      %203 = vsyncadd [#allocation4], 0
      %s205 = sshll.u32 [#allocation10], 4
      %s206 = int_to_ptr.vmem [resolvable:$true] %s205
      %s207 = sshll.u32 %s6, 4
      %s208 = int_to_ptr.hbm [resolvable:$true] %s207
      %210 = dma.vmem_to_hbm [thread:$0]  %s206, 16, %s208, [#allocation4]
    $region45: #{tpu_custom_call.1} parent=1 // pred_fallthru
      _
    // Predicated region
    $region46: #{tpu_custom_call.1} parent=1 // pred_check
      _
    $region47: #{tpu_custom_call.1} parent=1 // pred_check_branch
      %212 = sbr.rel (0) target = $region49
    $region48: #{tpu_custom_call.1} parent=1 // pred_region
      %214 = vsyncadd [#allocation12], 0
      %s216 = sshll.u32 [#allocation11], 4
      %s217 = int_to_ptr.vmem [resolvable:$true] %s216
      %s218 = sshll.u32 %s7, 4
      %s219 = int_to_ptr.hbm [resolvable:$true] %s218
      %221 = dma.vmem_to_hbm [thread:$0]  %s217, 16, %s219, [#allocation12]
    $region49: #{tpu_custom_call.1} parent=1 // pred_fallthru
      _
    // Predicated region
    $region50: #{tpu_custom_call.1} parent=1 // pred_check
      _
    $region51: #{tpu_custom_call.1} parent=1 // pred_check_branch
      %223 = sbr.rel (0) target = $region53
    $region52: #{tpu_custom_call.1} parent=1 // pred_region
      %225 = dma.done [#allocation4], 16
    $region53: #{tpu_custom_call.1} parent=1 // pred_fallthru
      _
    // Predicated region
    $region54: #{tpu_custom_call.1} parent=1 // pred_check
      _
    $region55: #{tpu_custom_call.1} parent=1 // pred_check_branch
      %227 = sbr.rel (0) target = $region57
    $region56: #{tpu_custom_call.1} parent=1 // pred_region
      %229 = dma.done [#allocation12], 16
    $region57: #{tpu_custom_call.1} parent=1 // pred_fallthru
      _
    %230 = vsyncpa [#allocation3], 1
    %231 = vsyncpa [#allocation6], 1
    %232 = vsyncpa [#allocation9], 1
    %233 = vsyncpa [#allocation4], 1
    %234 = vsyncpa [#allocation12], 1

</llo_original>
